<compile_context>
chip_gen: v6e
topology: v6e:2x2x1
jax: 0.10.0
libtpu: 0.0.40
codegen_flags: <defaults>
</compile_context>

<pallas_src>
import functools

import jax
import jax.numpy as jnp
from jax.experimental import pallas as pl
from jax.experimental.pallas import tpu as pltpu


def _region_nl_kernel(wcat_ref, bcat_ref, ww_ref, bw_ref, xw_ref, o_ref, *,
                      c_in, inter, q):
    """Embedded-gaussian non-local block over one lane-dense block of cells.

    xw_ref / o_ref : VMEM (4*c_in, L)   sublane = channel*4 + 2x2 corner,
                                        lane    = cell*q + pooled-window idx
    wcat_ref       : SMEM (c_in, 3*inter)  theta|phi|g 1x1-conv weights
    bcat_ref       : SMEM (3*inter,)       theta|phi|g biases
    ww_ref         : SMEM (inter, c_in)    final W 1x1 conv
    bw_ref         : SMEM (c_in,)
    """
    corners = 4                        # 2x2 max-pool window corners (sublanes)

    x = xw_ref[...]                                            # (4*c_in, L)
    xc = [x[ch * corners:(ch + 1) * corners, :] for ch in range(c_in)]

    # theta|phi|g 1x1 convs: contraction over c_in is tiny -> unrolled VPU
    # broadcast-FMAs with SMEM scalar weights (keeps the MXU out of it).
    # TODO(synk): at production channel counts switch to bf16 MXU matmuls
    # (f32 accumulation) on v6e/v7x instead of the unrolled FMA path.
    def project(t):
        acc = wcat_ref[0, t] * xc[0]
        for ch in range(1, c_in):
            acc = acc + wcat_ref[ch, t] * xc[ch]
        return acc + bcat_ref[t]                               # (4, L)

    theta = [project(d) for d in range(inter)]                 # per position
    phi_u = [project(inter + d) for d in range(inter)]
    g_u = [project(2 * inter + d) for d in range(inter)]

    # sub_sample 2x2 max-pool: the 4 window corners sit on sublanes.
    kv = jnp.concatenate(
        [jnp.max(p, axis=0, keepdims=True) for p in phi_u + g_u], axis=0)
    # kv: (2*inter, L); rows [0:inter] = pooled phi, rows [inter:] = pooled g.

    # Per-cell cyclic key shift: kv_s[kp][r, n*q + j] = kv[r, n*q + (j+kp)%q],
    # so every query lane sees key (j+kp)%q of ITS OWN cell.  Two global lane
    # rotates + a lane-mod select implement the group-local rotate exactly.
    lane_mod = jax.lax.broadcasted_iota(jnp.int32, kv.shape, 1) % q
    kv_s = [kv]
    for kp in range(1, q):
        a = jnp.roll(kv, -kp, axis=1)            # source lane L + kp
        b = jnp.roll(kv, q - kp, axis=1)         # source lane L + kp - q
        kv_s.append(jnp.where(lane_mod < q - kp, a, b))

    # Attention scores + softmax over the q keys of each cell (VPU / EUP only).
    scores = []
    for kp in range(q):
        s = theta[0] * kv_s[kp][0:1, :]
        for d in range(1, inter):
            s = s + theta[d] * kv_s[kp][d:d + 1, :]
        scores.append(s)                                       # (4, L)
    m = scores[0]
    for s in scores[1:]:
        m = jnp.maximum(m, s)
    exps = [jnp.exp(s - m) for s in scores]
    denom = exps[0]
    for e in exps[1:]:
        denom = denom + e
    inv = pl.reciprocal(denom, approx=True)                    # EUP slot
    probs = [e * inv for e in exps]

    # y = attention-weighted sum of pooled g (again tiny -> VPU FMAs).
    y = []
    for d in range(inter):
        acc = probs[0] * kv_s[0][inter + d:inter + d + 1, :]
        for kp in range(1, q):
            acc = acc + probs[kp] * kv_s[kp][inter + d:inter + d + 1, :]
        y.append(acc)                                          # (4, L)

    # Final W 1x1 conv + residual; one dense (4*c_in, L) store.
    out_rows = []
    for ch in range(c_in):
        acc = ww_ref[0, ch] * y[0]
        for d in range(1, inter):
            acc = acc + ww_ref[d, ch] * y[d]
        out_rows.append(acc + bw_ref[ch] + xc[ch])
    o_ref[...] = jnp.concatenate(out_rows, axis=0).astype(o_ref.dtype)


def region_nonlocal_block(x, params, grid=(4, 4)):
    """x: (B, C, H, W) float32 (NCHW, like torch).  Returns (B, C, H, W)."""
    B, C, H, W = x.shape
    gr, gc = grid
    assert H % gr == 0 and W % gc == 0
    h, w = H // gr, W // gc
    assert h % 2 == 0 and w % 2 == 0, "2x2 max-pool needs even cell dims"
    hq, wq = h // 2, w // 2
    q = hq * wq                       # pooled key positions per cell
    N = B * gr * gc                   # total number of grid cells
    lanes_total = N * q
    # TODO(synk): the unrolled-over-q VPU attention targets small cells; for
    # production cell sizes switch scores / weighted-sum to MXU matmuls tiled
    # over kv chunks (bf16 inputs, f32 accumulation) and re-derive the VMEM
    # budget per generation (v7x: 64 MiB).
    assert q <= 16, "kernel is specialized to small per-cell key counts"

    wt, bt, wp, bp, wg, bg, ww, bw = params
    inter = wt.shape[1]

    # Fused theta|phi|g weights + flat biases (read as SMEM scalars in-kernel).
    wcat = jnp.concatenate([wt, wp, wg], axis=1)                # (C, 3*inter)
    bcat = jnp.concatenate([bt, bp, bg], axis=1).reshape(-1)    # (3*inter,)
    bw_f = bw.reshape(-1)                                       # (C,)

    # Lane-dense layout: sublane = channel*4 + 2x2 corner, lane = cell*q +
    # pooled-window index.  For the toy shapes this is one (16, 128) slab.
    # TODO(synk): at production sizes this wrapper permute costs an extra HBM
    # pass each way; fold it into the kernel by reading NCHW cells directly
    # through a per-cell index_map.
    xw = (x.reshape(B, C, gr, hq, 2, gc, wq, 2)
           .transpose(1, 4, 7, 0, 2, 5, 3, 6)
           .reshape(4 * C, lanes_total))

    # Lane blocking: one grid step at toy sizes (per-step overhead dominates
    # on single-TC v5e/v6e); at production sizes >=2 lane-dense, 128-multiple
    # "parallel" blocks so v7x's two TensorCores each take a share.  The 2048
    # lane cap keeps double-buffered in+out blocks far below v7x's 64 MiB VMEM.
    lane_block = lanes_total
    if lanes_total > 2048 and lanes_total % 128 == 0:
        for cand in range(2048, 0, -128):
            if lanes_total % cand == 0 and cand % q == 0:
                lane_block = cand
                break
    num_blocks = lanes_total // lane_block

    smem_spec = pl.BlockSpec(memory_space=pltpu.MemorySpace.SMEM)
    x_spec = pl.BlockSpec((4 * C, lane_block), lambda i: (0, i))

    flops = 2 * N * h * w * (3 * C * inter + 2 * q * inter + inter * C)
    transcendentals = N * h * w * (q + 1)           # exp + approx reciprocal
    bytes_accessed = 2 * xw.size * xw.dtype.itemsize + 4 * (
        wcat.size + bcat.size + ww.size + bw_f.size)

    out_w = pl.pallas_call(
        functools.partial(_region_nl_kernel, c_in=C, inter=inter, q=q),
        out_shape=jax.ShapeDtypeStruct((4 * C, lanes_total), x.dtype),
        grid=(num_blocks,),
        in_specs=[smem_spec, smem_spec, smem_spec, smem_spec, x_spec],
        out_specs=x_spec,
        compiler_params=pltpu.CompilerParams(
            dimension_semantics=("parallel",),
            vmem_limit_bytes=32 * 1024 * 1024),
        cost_estimate=pl.CostEstimate(flops=flops,
                                      transcendentals=transcendentals,
                                      bytes_accessed=bytes_accessed),
    )(wcat, bcat, ww, bw_f, xw)

    # Undo the layout permutation back to NCHW.
    out = (out_w.reshape(C, 2, 2, B, gr, gc, hq, wq)
                .transpose(3, 0, 4, 6, 1, 5, 7, 2)
                .reshape(B, C, H, W))
    return out


def _reference(x, params, grid=(4, 4)):
    """Pure-JAX NCHW reference mirroring the torch forward exactly."""
    wt, bt, wp, bp, wg, bg, ww, bw = params
    B, C, H, W = x.shape
    gr, gc = grid
    h, w = H // gr, W // gc
    inter = wt.shape[1]

    def conv1x1(xc, Wm, b):
        return jnp.einsum('bchw,cd->bdhw', xc, Wm) + b.reshape(1, -1, 1, 1)

    def maxpool2(xc):
        Bq, Cq, hh, ww_ = xc.shape
        return jnp.max(xc.reshape(Bq, Cq, hh // 2, 2, ww_ // 2, 2), axis=(3, 5))

    def nl_block(cell):
        Bq = cell.shape[0]
        hwq = h * w
        theta = conv1x1(cell, wt, bt).reshape(Bq, inter, hwq).transpose(0, 2, 1)
        phi = maxpool2(conv1x1(cell, wp, bp)).reshape(Bq, inter, hwq // 4)
        g = maxpool2(conv1x1(cell, wg, bg)).reshape(Bq, inter, hwq // 4).transpose(0, 2, 1)
        f = jnp.matmul(theta, phi)
        fdc = jax.nn.softmax(f, axis=-1)
        y = jnp.matmul(fdc, g).transpose(0, 2, 1).reshape(Bq, inter, h, w)
        return conv1x1(y, ww, bw) + cell

    rows = []
    for i in range(gr):
        cols = []
        for j in range(gc):
            cell = x[:, :, i * h:(i + 1) * h, j * w:(j + 1) * w]
            cols.append(nl_block(cell))
        rows.append(jnp.concatenate(cols, axis=3))
    return jnp.concatenate(rows, axis=2)


if __name__ == "__main__":
    key = jax.random.PRNGKey(0)
    B, C, H, W = 2, 4, 16, 16
    grid = (4, 4)
    inter = max(C // 2, 1)

    ks = jax.random.split(key, 9)
    x = jax.random.normal(ks[0], (B, C, H, W), jnp.float32)
    s = 0.1
    wt = s * jax.random.normal(ks[1], (C, inter), jnp.float32)
    bt = s * jax.random.normal(ks[2], (1, inter), jnp.float32)
    wp = s * jax.random.normal(ks[3], (C, inter), jnp.float32)
    bp = s * jax.random.normal(ks[4], (1, inter), jnp.float32)
    wg = s * jax.random.normal(ks[5], (C, inter), jnp.float32)
    bg = s * jax.random.normal(ks[6], (1, inter), jnp.float32)
    ww = s * jax.random.normal(ks[7], (inter, C), jnp.float32)
    bw = s * jax.random.normal(ks[8], (1, C), jnp.float32)
    params = (wt, bt, wp, bp, wg, bg, ww, bw)

    out = region_nonlocal_block(x, params, grid)
    out = jax.block_until_ready(out)

    ref = _reference(x, params, grid)
    assert out.shape == (B, C, H, W)
    # Tolerance is 1e-3 because the kernel uses the EUP approximate reciprocal
    # for the softmax denominator (the reference divides exactly).
    assert jnp.allclose(out, ref, atol=1e-3, rtol=1e-3), \
        float(jnp.max(jnp.abs(out - ref)))
    print("KERNEL_OK")
</pallas_src>

<mosaic_0001>
module attributes {stable_mosaic.version = 11 : i64} {
  func.func @_region_nl_kernel(%arg0: i32, %arg1: memref<4x6xf32, #tpu.memory_space<smem>>, %arg2: memref<6xf32, #tpu.memory_space<smem>>, %arg3: memref<2x4xf32, #tpu.memory_space<smem>>, %arg4: memref<4xf32, #tpu.memory_space<smem>>, %arg5: memref<16x128xf32, #tpu.memory_space<vmem>>, %arg6: memref<16x128xf32, #tpu.memory_space<vmem>>) attributes {dimension_semantics = [#tpu.dimension_semantics<parallel>], iteration_bounds = array<i64: 1>, scalar_prefetch = 0 : i64, scratch_operands = 0 : i64, tpu.core_type = #tpu.core_type<tc>, window_params = [{transform_indices = @transform_0, window_bounds = array<i64: 4, 6>}, {transform_indices = @transform_1, window_bounds = array<i64: 6>}, {transform_indices = @transform_2, window_bounds = array<i64: 2, 4>}, {transform_indices = @transform_3, window_bounds = array<i64: 4>}, {transform_indices = @transform_4, window_bounds = array<i64: 16, 128>}, {transform_indices = @transform_5, window_bounds = array<i64: 16, 128>}]} {
    %c0 = arith.constant 0 : index
    %c0_0 = arith.constant 0 : index
    %0 = vector.load %arg5[%c0, %c0_0] : memref<16x128xf32, #tpu.memory_space<vmem>>, vector<16x128xf32>
    %1 = vector.extract_strided_slice %0 {offsets = [0, 0], sizes = [4, 128], strides = [1, 1]} : vector<16x128xf32> to vector<4x128xf32>
    %2 = vector.extract_strided_slice %0 {offsets = [4, 0], sizes = [4, 128], strides = [1, 1]} : vector<16x128xf32> to vector<4x128xf32>
    %3 = vector.extract_strided_slice %0 {offsets = [8, 0], sizes = [4, 128], strides = [1, 1]} : vector<16x128xf32> to vector<4x128xf32>
    %4 = vector.extract_strided_slice %0 {offsets = [12, 0], sizes = [4, 128], strides = [1, 1]} : vector<16x128xf32> to vector<4x128xf32>
    %c0_1 = arith.constant 0 : index
    %c0_2 = arith.constant 0 : index
    %5 = memref.load %arg1[%c0_1, %c0_2] : memref<4x6xf32, #tpu.memory_space<smem>>
    %6 = vector.broadcast %5 : f32 to vector<4x128xf32>
    %7 = arith.mulf %6, %1 : vector<4x128xf32>
    %c1 = arith.constant 1 : index
    %c0_3 = arith.constant 0 : index
    %8 = memref.load %arg1[%c1, %c0_3] : memref<4x6xf32, #tpu.memory_space<smem>>
    %9 = vector.broadcast %8 : f32 to vector<4x128xf32>
    %10 = arith.mulf %9, %2 : vector<4x128xf32>
    %11 = arith.addf %7, %10 : vector<4x128xf32>
    %c2 = arith.constant 2 : index
    %c0_4 = arith.constant 0 : index
    %12 = memref.load %arg1[%c2, %c0_4] : memref<4x6xf32, #tpu.memory_space<smem>>
    %13 = vector.broadcast %12 : f32 to vector<4x128xf32>
    %14 = arith.mulf %13, %3 : vector<4x128xf32>
    %15 = arith.addf %11, %14 : vector<4x128xf32>
    %c3 = arith.constant 3 : index
    %c0_5 = arith.constant 0 : index
    %16 = memref.load %arg1[%c3, %c0_5] : memref<4x6xf32, #tpu.memory_space<smem>>
    %17 = vector.broadcast %16 : f32 to vector<4x128xf32>
    %18 = arith.mulf %17, %4 : vector<4x128xf32>
    %19 = arith.addf %15, %18 : vector<4x128xf32>
    %c0_6 = arith.constant 0 : index
    %20 = memref.load %arg2[%c0_6] : memref<6xf32, #tpu.memory_space<smem>>
    %21 = vector.broadcast %20 : f32 to vector<4x128xf32>
    %22 = arith.addf %19, %21 : vector<4x128xf32>
    %c0_7 = arith.constant 0 : index
    %c1_8 = arith.constant 1 : index
    %23 = memref.load %arg1[%c0_7, %c1_8] : memref<4x6xf32, #tpu.memory_space<smem>>
    %24 = vector.broadcast %23 : f32 to vector<4x128xf32>
    %25 = arith.mulf %24, %1 : vector<4x128xf32>
    %c1_9 = arith.constant 1 : index
    %c1_10 = arith.constant 1 : index
    %26 = memref.load %arg1[%c1_9, %c1_10] : memref<4x6xf32, #tpu.memory_space<smem>>
    %27 = vector.broadcast %26 : f32 to vector<4x128xf32>
    %28 = arith.mulf %27, %2 : vector<4x128xf32>
    %29 = arith.addf %25, %28 : vector<4x128xf32>
    %c2_11 = arith.constant 2 : index
    %c1_12 = arith.constant 1 : index
    %30 = memref.load %arg1[%c2_11, %c1_12] : memref<4x6xf32, #tpu.memory_space<smem>>
    %31 = vector.broadcast %30 : f32 to vector<4x128xf32>
    %32 = arith.mulf %31, %3 : vector<4x128xf32>
    %33 = arith.addf %29, %32 : vector<4x128xf32>
    %c3_13 = arith.constant 3 : index
    %c1_14 = arith.constant 1 : index
    %34 = memref.load %arg1[%c3_13, %c1_14] : memref<4x6xf32, #tpu.memory_space<smem>>
    %35 = vector.broadcast %34 : f32 to vector<4x128xf32>
    %36 = arith.mulf %35, %4 : vector<4x128xf32>
    %37 = arith.addf %33, %36 : vector<4x128xf32>
    %c1_15 = arith.constant 1 : index
    %38 = memref.load %arg2[%c1_15] : memref<6xf32, #tpu.memory_space<smem>>
    %39 = vector.broadcast %38 : f32 to vector<4x128xf32>
    %40 = arith.addf %37, %39 : vector<4x128xf32>
    %c0_16 = arith.constant 0 : index
    %c2_17 = arith.constant 2 : index
    %41 = memref.load %arg1[%c0_16, %c2_17] : memref<4x6xf32, #tpu.memory_space<smem>>
    %42 = vector.broadcast %41 : f32 to vector<4x128xf32>
    %43 = arith.mulf %42, %1 : vector<4x128xf32>
    %c1_18 = arith.constant 1 : index
    %c2_19 = arith.constant 2 : index
    %44 = memref.load %arg1[%c1_18, %c2_19] : memref<4x6xf32, #tpu.memory_space<smem>>
    %45 = vector.broadcast %44 : f32 to vector<4x128xf32>
    %46 = arith.mulf %45, %2 : vector<4x128xf32>
    %47 = arith.addf %43, %46 : vector<4x128xf32>
    %c2_20 = arith.constant 2 : index
    %c2_21 = arith.constant 2 : index
    %48 = memref.load %arg1[%c2_20, %c2_21] : memref<4x6xf32, #tpu.memory_space<smem>>
    %49 = vector.broadcast %48 : f32 to vector<4x128xf32>
    %50 = arith.mulf %49, %3 : vector<4x128xf32>
    %51 = arith.addf %47, %50 : vector<4x128xf32>
    %c3_22 = arith.constant 3 : index
    %c2_23 = arith.constant 2 : index
    %52 = memref.load %arg1[%c3_22, %c2_23] : memref<4x6xf32, #tpu.memory_space<smem>>
    %53 = vector.broadcast %52 : f32 to vector<4x128xf32>
    %54 = arith.mulf %53, %4 : vector<4x128xf32>
    %55 = arith.addf %51, %54 : vector<4x128xf32>
    %c2_24 = arith.constant 2 : index
    %56 = memref.load %arg2[%c2_24] : memref<6xf32, #tpu.memory_space<smem>>
    %57 = vector.broadcast %56 : f32 to vector<4x128xf32>
    %58 = arith.addf %55, %57 : vector<4x128xf32>
    %c0_25 = arith.constant 0 : index
    %c3_26 = arith.constant 3 : index
    %59 = memref.load %arg1[%c0_25, %c3_26] : memref<4x6xf32, #tpu.memory_space<smem>>
    %60 = vector.broadcast %59 : f32 to vector<4x128xf32>
    %61 = arith.mulf %60, %1 : vector<4x128xf32>
    %c1_27 = arith.constant 1 : index
    %c3_28 = arith.constant 3 : index
    %62 = memref.load %arg1[%c1_27, %c3_28] : memref<4x6xf32, #tpu.memory_space<smem>>
    %63 = vector.broadcast %62 : f32 to vector<4x128xf32>
    %64 = arith.mulf %63, %2 : vector<4x128xf32>
    %65 = arith.addf %61, %64 : vector<4x128xf32>
    %c2_29 = arith.constant 2 : index
    %c3_30 = arith.constant 3 : index
    %66 = memref.load %arg1[%c2_29, %c3_30] : memref<4x6xf32, #tpu.memory_space<smem>>
    %67 = vector.broadcast %66 : f32 to vector<4x128xf32>
    %68 = arith.mulf %67, %3 : vector<4x128xf32>
    %69 = arith.addf %65, %68 : vector<4x128xf32>
    %c3_31 = arith.constant 3 : index
    %c3_32 = arith.constant 3 : index
    %70 = memref.load %arg1[%c3_31, %c3_32] : memref<4x6xf32, #tpu.memory_space<smem>>
    %71 = vector.broadcast %70 : f32 to vector<4x128xf32>
    %72 = arith.mulf %71, %4 : vector<4x128xf32>
    %73 = arith.addf %69, %72 : vector<4x128xf32>
    %c3_33 = arith.constant 3 : index
    %74 = memref.load %arg2[%c3_33] : memref<6xf32, #tpu.memory_space<smem>>
    %75 = vector.broadcast %74 : f32 to vector<4x128xf32>
    %76 = arith.addf %73, %75 : vector<4x128xf32>
    %c0_34 = arith.constant 0 : index
    %c4 = arith.constant 4 : index
    %77 = memref.load %arg1[%c0_34, %c4] : memref<4x6xf32, #tpu.memory_space<smem>>
    %78 = vector.broadcast %77 : f32 to vector<4x128xf32>
    %79 = arith.mulf %78, %1 : vector<4x128xf32>
    %c1_35 = arith.constant 1 : index
    %c4_36 = arith.constant 4 : index
    %80 = memref.load %arg1[%c1_35, %c4_36] : memref<4x6xf32, #tpu.memory_space<smem>>
    %81 = vector.broadcast %80 : f32 to vector<4x128xf32>
    %82 = arith.mulf %81, %2 : vector<4x128xf32>
    %83 = arith.addf %79, %82 : vector<4x128xf32>
    %c2_37 = arith.constant 2 : index
    %c4_38 = arith.constant 4 : index
    %84 = memref.load %arg1[%c2_37, %c4_38] : memref<4x6xf32, #tpu.memory_space<smem>>
    %85 = vector.broadcast %84 : f32 to vector<4x128xf32>
    %86 = arith.mulf %85, %3 : vector<4x128xf32>
    %87 = arith.addf %83, %86 : vector<4x128xf32>
    %c3_39 = arith.constant 3 : index
    %c4_40 = arith.constant 4 : index
    %88 = memref.load %arg1[%c3_39, %c4_40] : memref<4x6xf32, #tpu.memory_space<smem>>
    %89 = vector.broadcast %88 : f32 to vector<4x128xf32>
    %90 = arith.mulf %89, %4 : vector<4x128xf32>
    %91 = arith.addf %87, %90 : vector<4x128xf32>
    %c4_41 = arith.constant 4 : index
    %92 = memref.load %arg2[%c4_41] : memref<6xf32, #tpu.memory_space<smem>>
    %93 = vector.broadcast %92 : f32 to vector<4x128xf32>
    %94 = arith.addf %91, %93 : vector<4x128xf32>
    %c0_42 = arith.constant 0 : index
    %c5 = arith.constant 5 : index
    %95 = memref.load %arg1[%c0_42, %c5] : memref<4x6xf32, #tpu.memory_space<smem>>
    %96 = vector.broadcast %95 : f32 to vector<4x128xf32>
    %97 = arith.mulf %96, %1 : vector<4x128xf32>
    %c1_43 = arith.constant 1 : index
    %c5_44 = arith.constant 5 : index
    %98 = memref.load %arg1[%c1_43, %c5_44] : memref<4x6xf32, #tpu.memory_space<smem>>
    %99 = vector.broadcast %98 : f32 to vector<4x128xf32>
    %100 = arith.mulf %99, %2 : vector<4x128xf32>
    %101 = arith.addf %97, %100 : vector<4x128xf32>
    %c2_45 = arith.constant 2 : index
    %c5_46 = arith.constant 5 : index
    %102 = memref.load %arg1[%c2_45, %c5_46] : memref<4x6xf32, #tpu.memory_space<smem>>
    %103 = vector.broadcast %102 : f32 to vector<4x128xf32>
    %104 = arith.mulf %103, %3 : vector<4x128xf32>
    %105 = arith.addf %101, %104 : vector<4x128xf32>
    %c3_47 = arith.constant 3 : index
    %c5_48 = arith.constant 5 : index
    %106 = memref.load %arg1[%c3_47, %c5_48] : memref<4x6xf32, #tpu.memory_space<smem>>
    %107 = vector.broadcast %106 : f32 to vector<4x128xf32>
    %108 = arith.mulf %107, %4 : vector<4x128xf32>
    %109 = arith.addf %105, %108 : vector<4x128xf32>
    %c5_49 = arith.constant 5 : index
    %110 = memref.load %arg2[%c5_49] : memref<6xf32, #tpu.memory_space<smem>>
    %111 = vector.broadcast %110 : f32 to vector<4x128xf32>
    %112 = arith.addf %109, %111 : vector<4x128xf32>
    %cst = arith.constant dense<0xFF800000> : vector<128xf32>
    %113 = vector.multi_reduction <maximumf>, %58, %cst [0] : vector<4x128xf32> to vector<128xf32>
    %114 = vector.shape_cast %113 : vector<128xf32> to vector<1x128xf32>
    %cst_50 = arith.constant dense<0xFF800000> : vector<128xf32>
    %115 = vector.multi_reduction <maximumf>, %76, %cst_50 [0] : vector<4x128xf32> to vector<128xf32>
    %116 = vector.shape_cast %115 : vector<128xf32> to vector<1x128xf32>
    %cst_51 = arith.constant dense<0xFF800000> : vector<128xf32>
    %117 = vector.multi_reduction <maximumf>, %94, %cst_51 [0] : vector<4x128xf32> to vector<128xf32>
    %118 = vector.shape_cast %117 : vector<128xf32> to vector<1x128xf32>
    %cst_52 = arith.constant dense<0xFF800000> : vector<128xf32>
    %119 = vector.multi_reduction <maximumf>, %112, %cst_52 [0] : vector<4x128xf32> to vector<128xf32>
    %120 = vector.shape_cast %119 : vector<128xf32> to vector<1x128xf32>
    %121 = tpu.concatenate %114, %116, %118, %120 in 0 : vector<1x128xf32>, vector<1x128xf32>, vector<1x128xf32>, vector<1x128xf32> -> vector<4x128xf32>
    %122 = tpu.iota {dimensions = array<i32: 1>} : vector<4x128xi32>
    %c4_i32 = arith.constant 4 : i32
    %c0_i32 = arith.constant 0 : i32
    %123 = arith.cmpi eq, %c4_i32, %c0_i32 : i32
    %c1_i32 = arith.constant 1 : i32
    %124 = arith.select %123, %c1_i32, %c4_i32 : i32
    %125 = vector.broadcast %124 : i32 to vector<4x128xi32>
    %126 = arith.remsi %122, %125 : vector<4x128xi32>
    %c0_i32_53 = arith.constant 0 : i32
    %127 = vector.broadcast %c0_i32_53 : i32 to vector<4x128xi32>
    %128 = arith.cmpi ne, %126, %127 : vector<4x128xi32>
    %c0_i32_54 = arith.constant 0 : i32
    %129 = vector.broadcast %c0_i32_54 : i32 to vector<4x128xi32>
    %130 = arith.cmpi slt, %126, %129 : vector<4x128xi32>
    %c0_i32_55 = arith.constant 0 : i32
    %131 = arith.cmpi slt, %124, %c0_i32_55 : i32
    %132 = vector.broadcast %131 : i1 to vector<4x128xi1>
    %133 = vector.broadcast %132 : vector<4x128xi1> to vector<4x128xi1>
    %134 = arith.xori %130, %133 : vector<4x128xi1>
    %135 = arith.andi %134, %128 : vector<4x128xi1>
    %136 = vector.broadcast %124 : i32 to vector<4x128xi32>
    %137 = arith.addi %126, %136 : vector<4x128xi32>
    %138 = arith.select %135, %137, %126 : vector<4x128xi1>, vector<4x128xi32>
    %139 = vector.extract_strided_slice %121 {offsets = [0, 1], sizes = [4, 127], strides = [1, 1]} : vector<4x128xf32> to vector<4x127xf32>
    %140 = vector.extract_strided_slice %121 {offsets = [0, 0], sizes = [4, 1], strides = [1, 1]} : vector<4x128xf32> to vector<4x1xf32>
    %141 = tpu.concatenate %139, %140 in 1 : vector<4x127xf32>, vector<4x1xf32> -> vector<4x128xf32>
    %142 = vector.extract_strided_slice %121 {offsets = [0, 125], sizes = [4, 3], strides = [1, 1]} : vector<4x128xf32> to vector<4x3xf32>
    %143 = vector.extract_strided_slice %121 {offsets = [0, 0], sizes = [4, 125], strides = [1, 1]} : vector<4x128xf32> to vector<4x125xf32>
    %144 = tpu.concatenate %142, %143 in 1 : vector<4x3xf32>, vector<4x125xf32> -> vector<4x128xf32>
    %c3_i32 = arith.constant 3 : i32
    %145 = vector.broadcast %c3_i32 : i32 to vector<4x128xi32>
    %146 = arith.cmpi slt, %138, %145 : vector<4x128xi32>
    %147 = arith.select %146, %141, %144 : vector<4x128xi1>, vector<4x128xf32>
    %148 = vector.extract_strided_slice %121 {offsets = [0, 2], sizes = [4, 126], strides = [1, 1]} : vector<4x128xf32> to vector<4x126xf32>
    %149 = vector.extract_strided_slice %121 {offsets = [0, 0], sizes = [4, 2], strides = [1, 1]} : vector<4x128xf32> to vector<4x2xf32>
    %150 = tpu.concatenate %148, %149 in 1 : vector<4x126xf32>, vector<4x2xf32> -> vector<4x128xf32>
    %151 = vector.extract_strided_slice %121 {offsets = [0, 126], sizes = [4, 2], strides = [1, 1]} : vector<4x128xf32> to vector<4x2xf32>
    %152 = vector.extract_strided_slice %121 {offsets = [0, 0], sizes = [4, 126], strides = [1, 1]} : vector<4x128xf32> to vector<4x126xf32>
    %153 = tpu.concatenate %151, %152 in 1 : vector<4x2xf32>, vector<4x126xf32> -> vector<4x128xf32>
    %c2_i32 = arith.constant 2 : i32
    %154 = vector.broadcast %c2_i32 : i32 to vector<4x128xi32>
    %155 = arith.cmpi slt, %138, %154 : vector<4x128xi32>
    %156 = arith.select %155, %150, %153 : vector<4x128xi1>, vector<4x128xf32>
    %157 = vector.extract_strided_slice %121 {offsets = [0, 3], sizes = [4, 125], strides = [1, 1]} : vector<4x128xf32> to vector<4x125xf32>
    %158 = vector.extract_strided_slice %121 {offsets = [0, 0], sizes = [4, 3], strides = [1, 1]} : vector<4x128xf32> to vector<4x3xf32>
    %159 = tpu.concatenate %157, %158 in 1 : vector<4x125xf32>, vector<4x3xf32> -> vector<4x128xf32>
    %160 = vector.extract_strided_slice %121 {offsets = [0, 127], sizes = [4, 1], strides = [1, 1]} : vector<4x128xf32> to vector<4x1xf32>
    %161 = vector.extract_strided_slice %121 {offsets = [0, 0], sizes = [4, 127], strides = [1, 1]} : vector<4x128xf32> to vector<4x127xf32>
    %162 = tpu.concatenate %160, %161 in 1 : vector<4x1xf32>, vector<4x127xf32> -> vector<4x128xf32>
    %c1_i32_56 = arith.constant 1 : i32
    %163 = vector.broadcast %c1_i32_56 : i32 to vector<4x128xi32>
    %164 = arith.cmpi slt, %138, %163 : vector<4x128xi32>
    %165 = arith.select %164, %159, %162 : vector<4x128xi1>, vector<4x128xf32>
    %166 = vector.extract_strided_slice %121 {offsets = [0, 0], sizes = [1, 128], strides = [1, 1]} : vector<4x128xf32> to vector<1x128xf32>
    %167 = vector.broadcast %166 : vector<1x128xf32> to vector<4x128xf32>
    %168 = arith.mulf %22, %167 : vector<4x128xf32>
    %169 = vector.extract_strided_slice %121 {offsets = [1, 0], sizes = [1, 128], strides = [1, 1]} : vector<4x128xf32> to vector<1x128xf32>
    %170 = vector.broadcast %169 : vector<1x128xf32> to vector<4x128xf32>
    %171 = arith.mulf %40, %170 : vector<4x128xf32>
    %172 = arith.addf %168, %171 : vector<4x128xf32>
    %173 = vector.extract_strided_slice %147 {offsets = [0, 0], sizes = [1, 128], strides = [1, 1]} : vector<4x128xf32> to vector<1x128xf32>
    %174 = vector.broadcast %173 : vector<1x128xf32> to vector<4x128xf32>
    %175 = arith.mulf %22, %174 : vector<4x128xf32>
    %176 = vector.extract_strided_slice %147 {offsets = [1, 0], sizes = [1, 128], strides = [1, 1]} : vector<4x128xf32> to vector<1x128xf32>
    %177 = vector.broadcast %176 : vector<1x128xf32> to vector<4x128xf32>
    %178 = arith.mulf %40, %177 : vector<4x128xf32>
    %179 = arith.addf %175, %178 : vector<4x128xf32>
    %180 = vector.extract_strided_slice %156 {offsets = [0, 0], sizes = [1, 128], strides = [1, 1]} : vector<4x128xf32> to vector<1x128xf32>
    %181 = vector.broadcast %180 : vector<1x128xf32> to vector<4x128xf32>
    %182 = arith.mulf %22, %181 : vector<4x128xf32>
    %183 = vector.extract_strided_slice %156 {offsets = [1, 0], sizes = [1, 128], strides = [1, 1]} : vector<4x128xf32> to vector<1x128xf32>
    %184 = vector.broadcast %183 : vector<1x128xf32> to vector<4x128xf32>
    %185 = arith.mulf %40, %184 : vector<4x128xf32>
    %186 = arith.addf %182, %185 : vector<4x128xf32>
    %187 = vector.extract_strided_slice %165 {offsets = [0, 0], sizes = [1, 128], strides = [1, 1]} : vector<4x128xf32> to vector<1x128xf32>
    %188 = vector.broadcast %187 : vector<1x128xf32> to vector<4x128xf32>
    %189 = arith.mulf %22, %188 : vector<4x128xf32>
    %190 = vector.extract_strided_slice %165 {offsets = [1, 0], sizes = [1, 128], strides = [1, 1]} : vector<4x128xf32> to vector<1x128xf32>
    %191 = vector.broadcast %190 : vector<1x128xf32> to vector<4x128xf32>
    %192 = arith.mulf %40, %191 : vector<4x128xf32>
    %193 = arith.addf %189, %192 : vector<4x128xf32>
    %194 = arith.maximumf %172, %179 : vector<4x128xf32>
    %195 = arith.maximumf %194, %186 : vector<4x128xf32>
    %196 = arith.maximumf %195, %193 : vector<4x128xf32>
    %197 = arith.subf %172, %196 : vector<4x128xf32>
    %198 = math.exp %197 : vector<4x128xf32>
    %199 = arith.subf %179, %196 : vector<4x128xf32>
    %200 = math.exp %199 : vector<4x128xf32>
    %201 = arith.subf %186, %196 : vector<4x128xf32>
    %202 = math.exp %201 : vector<4x128xf32>
    %203 = arith.subf %193, %196 : vector<4x128xf32>
    %204 = math.exp %203 : vector<4x128xf32>
    %205 = arith.addf %198, %200 : vector<4x128xf32>
    %206 = arith.addf %205, %202 : vector<4x128xf32>
    %207 = arith.addf %206, %204 : vector<4x128xf32>
    %208 = tpu.reciprocal %207 {approx = true} : vector<4x128xf32> -> vector<4x128xf32>
    %209 = arith.mulf %198, %208 : vector<4x128xf32>
    %210 = arith.mulf %200, %208 : vector<4x128xf32>
    %211 = arith.mulf %202, %208 : vector<4x128xf32>
    %212 = arith.mulf %204, %208 : vector<4x128xf32>
    %213 = vector.extract_strided_slice %121 {offsets = [2, 0], sizes = [1, 128], strides = [1, 1]} : vector<4x128xf32> to vector<1x128xf32>
    %214 = vector.broadcast %213 : vector<1x128xf32> to vector<4x128xf32>
    %215 = arith.mulf %209, %214 : vector<4x128xf32>
    %216 = vector.extract_strided_slice %147 {offsets = [2, 0], sizes = [1, 128], strides = [1, 1]} : vector<4x128xf32> to vector<1x128xf32>
    %217 = vector.broadcast %216 : vector<1x128xf32> to vector<4x128xf32>
    %218 = arith.mulf %210, %217 : vector<4x128xf32>
    %219 = arith.addf %215, %218 : vector<4x128xf32>
    %220 = vector.extract_strided_slice %156 {offsets = [2, 0], sizes = [1, 128], strides = [1, 1]} : vector<4x128xf32> to vector<1x128xf32>
    %221 = vector.broadcast %220 : vector<1x128xf32> to vector<4x128xf32>
    %222 = arith.mulf %211, %221 : vector<4x128xf32>
    %223 = arith.addf %219, %222 : vector<4x128xf32>
    %224 = vector.extract_strided_slice %165 {offsets = [2, 0], sizes = [1, 128], strides = [1, 1]} : vector<4x128xf32> to vector<1x128xf32>
    %225 = vector.broadcast %224 : vector<1x128xf32> to vector<4x128xf32>
    %226 = arith.mulf %212, %225 : vector<4x128xf32>
    %227 = arith.addf %223, %226 : vector<4x128xf32>
    %228 = vector.extract_strided_slice %121 {offsets = [3, 0], sizes = [1, 128], strides = [1, 1]} : vector<4x128xf32> to vector<1x128xf32>
    %229 = vector.broadcast %228 : vector<1x128xf32> to vector<4x128xf32>
    %230 = arith.mulf %209, %229 : vector<4x128xf32>
    %231 = vector.extract_strided_slice %147 {offsets = [3, 0], sizes = [1, 128], strides = [1, 1]} : vector<4x128xf32> to vector<1x128xf32>
    %232 = vector.broadcast %231 : vector<1x128xf32> to vector<4x128xf32>
    %233 = arith.mulf %210, %232 : vector<4x128xf32>
    %234 = arith.addf %230, %233 : vector<4x128xf32>
    %235 = vector.extract_strided_slice %156 {offsets = [3, 0], sizes = [1, 128], strides = [1, 1]} : vector<4x128xf32> to vector<1x128xf32>
    %236 = vector.broadcast %235 : vector<1x128xf32> to vector<4x128xf32>
    %237 = arith.mulf %211, %236 : vector<4x128xf32>
    %238 = arith.addf %234, %237 : vector<4x128xf32>
    %239 = vector.extract_strided_slice %165 {offsets = [3, 0], sizes = [1, 128], strides = [1, 1]} : vector<4x128xf32> to vector<1x128xf32>
    %240 = vector.broadcast %239 : vector<1x128xf32> to vector<4x128xf32>
    %241 = arith.mulf %212, %240 : vector<4x128xf32>
    %242 = arith.addf %238, %241 : vector<4x128xf32>
    %c0_57 = arith.constant 0 : index
    %c0_58 = arith.constant 0 : index
    %243 = memref.load %arg3[%c0_57, %c0_58] : memref<2x4xf32, #tpu.memory_space<smem>>
    %244 = vector.broadcast %243 : f32 to vector<4x128xf32>
    %245 = arith.mulf %244, %227 : vector<4x128xf32>
    %c1_59 = arith.constant 1 : index
    %c0_60 = arith.constant 0 : index
    %246 = memref.load %arg3[%c1_59, %c0_60] : memref<2x4xf32, #tpu.memory_space<smem>>
    %247 = vector.broadcast %246 : f32 to vector<4x128xf32>
    %248 = arith.mulf %247, %242 : vector<4x128xf32>
    %249 = arith.addf %245, %248 : vector<4x128xf32>
    %c0_61 = arith.constant 0 : index
    %250 = memref.load %arg4[%c0_61] : memref<4xf32, #tpu.memory_space<smem>>
    %251 = vector.broadcast %250 : f32 to vector<4x128xf32>
    %252 = arith.addf %249, %251 : vector<4x128xf32>
    %253 = arith.addf %252, %1 : vector<4x128xf32>
    %c0_62 = arith.constant 0 : index
    %c1_63 = arith.constant 1 : index
    %254 = memref.load %arg3[%c0_62, %c1_63] : memref<2x4xf32, #tpu.memory_space<smem>>
    %255 = vector.broadcast %254 : f32 to vector<4x128xf32>
    %256 = arith.mulf %255, %227 : vector<4x128xf32>
    %c1_64 = arith.constant 1 : index
    %c1_65 = arith.constant 1 : index
    %257 = memref.load %arg3[%c1_64, %c1_65] : memref<2x4xf32, #tpu.memory_space<smem>>
    %258 = vector.broadcast %257 : f32 to vector<4x128xf32>
    %259 = arith.mulf %258, %242 : vector<4x128xf32>
    %260 = arith.addf %256, %259 : vector<4x128xf32>
    %c1_66 = arith.constant 1 : index
    %261 = memref.load %arg4[%c1_66] : memref<4xf32, #tpu.memory_space<smem>>
    %262 = vector.broadcast %261 : f32 to vector<4x128xf32>
    %263 = arith.addf %260, %262 : vector<4x128xf32>
    %264 = arith.addf %263, %2 : vector<4x128xf32>
    %c0_67 = arith.constant 0 : index
    %c2_68 = arith.constant 2 : index
    %265 = memref.load %arg3[%c0_67, %c2_68] : memref<2x4xf32, #tpu.memory_space<smem>>
    %266 = vector.broadcast %265 : f32 to vector<4x128xf32>
    %267 = arith.mulf %266, %227 : vector<4x128xf32>
    %c1_69 = arith.constant 1 : index
    %c2_70 = arith.constant 2 : index
    %268 = memref.load %arg3[%c1_69, %c2_70] : memref<2x4xf32, #tpu.memory_space<smem>>
    %269 = vector.broadcast %268 : f32 to vector<4x128xf32>
    %270 = arith.mulf %269, %242 : vector<4x128xf32>
    %271 = arith.addf %267, %270 : vector<4x128xf32>
    %c2_71 = arith.constant 2 : index
    %272 = memref.load %arg4[%c2_71] : memref<4xf32, #tpu.memory_space<smem>>
    %273 = vector.broadcast %272 : f32 to vector<4x128xf32>
    %274 = arith.addf %271, %273 : vector<4x128xf32>
    %275 = arith.addf %274, %3 : vector<4x128xf32>
    %c0_72 = arith.constant 0 : index
    %c3_73 = arith.constant 3 : index
    %276 = memref.load %arg3[%c0_72, %c3_73] : memref<2x4xf32, #tpu.memory_space<smem>>
    %277 = vector.broadcast %276 : f32 to vector<4x128xf32>
    %278 = arith.mulf %277, %227 : vector<4x128xf32>
    %c1_74 = arith.constant 1 : index
    %c3_75 = arith.constant 3 : index
    %279 = memref.load %arg3[%c1_74, %c3_75] : memref<2x4xf32, #tpu.memory_space<smem>>
    %280 = vector.broadcast %279 : f32 to vector<4x128xf32>
    %281 = arith.mulf %280, %242 : vector<4x128xf32>
    %282 = arith.addf %278, %281 : vector<4x128xf32>
    %c3_76 = arith.constant 3 : index
    %283 = memref.load %arg4[%c3_76] : memref<4xf32, #tpu.memory_space<smem>>
    %284 = vector.broadcast %283 : f32 to vector<4x128xf32>
    %285 = arith.addf %282, %284 : vector<4x128xf32>
    %286 = arith.addf %285, %4 : vector<4x128xf32>
    %287 = tpu.concatenate %253, %264, %275, %286 in 0 : vector<4x128xf32>, vector<4x128xf32>, vector<4x128xf32>, vector<4x128xf32> -> vector<16x128xf32>
    %c0_77 = arith.constant 0 : index
    %c0_78 = arith.constant 0 : index
    %288 = vector.load %arg6[%c0_77, %c0_78] : memref<16x128xf32, #tpu.memory_space<vmem>>, vector<16x128xf32>
    tpu.vector_store %arg6[%c0_77, %c0_78], %287 {strides = array<i32>} : memref<16x128xf32, #tpu.memory_space<vmem>>, vector<16x128xf32>,
    return
  }
  func.func @transform_0(%arg0: i32) -> (i32, i32) {
    %c0_i32 = arith.constant 0 : i32
    %c0_i32_0 = arith.constant 0 : i32
    %c0_i32_1 = arith.constant 0 : i32
    return %c0_i32, %c0_i32_0 : i32, i32
  }
  func.func @transform_1(%arg0: i32) -> i32 {
    %c0_i32 = arith.constant 0 : i32
    %c0_i32_0 = arith.constant 0 : i32
    return %c0_i32 : i32
  }
  func.func @transform_2(%arg0: i32) -> (i32, i32) {
    %c0_i32 = arith.constant 0 : i32
    %c0_i32_0 = arith.constant 0 : i32
    %c0_i32_1 = arith.constant 0 : i32
    return %c0_i32, %c0_i32_0 : i32, i32
  }
  func.func @transform_3(%arg0: i32) -> i32 {
    %c0_i32 = arith.constant 0 : i32
    %c0_i32_0 = arith.constant 0 : i32
    return %c0_i32 : i32
  }
  func.func @transform_4(%arg0: i32) -> (i32, i32) {
    %c0_i32 = arith.constant 0 : i32
    %c0_i32_0 = arith.constant 0 : i32
    return %c0_i32, %arg0 : i32, i32
  }
  func.func @transform_5(%arg0: i32) -> (i32, i32) {
    %c0_i32 = arith.constant 0 : i32
    %c0_i32_0 = arith.constant 0 : i32
    return %c0_i32, %arg0 : i32, i32
  }
}

</mosaic_0001>

<llo_original>
// kernel: tpu_custom_call.1
$region0: #{tpu_custom_call.1}
  #allocation0 [shape = 'u32[]', space=smem, size = 0x4, offset = 0x4, fixed_abs, tag = 'smem constant byte address 0x4 - core index']
  #allocation1 [shape = 'u32[144,128]{1,0:T(1,128)}', space=vmem, size = 0x12000, scoped, tag = 'internal scratch']
  %s0 = inlined_call_operand.hbm [shape: f32[4,6], index: 0, kind: input, shape index: {}]
  %s1 = inlined_call_operand.vmem [shape: f32[6], index: 1, kind: input, shape index: {}]
  %s2 = inlined_call_operand.vmem [shape: f32[2,4], index: 2, kind: input, shape index: {}]
  %s3 = inlined_call_operand.vmem [shape: f32[4], index: 3, kind: input, shape index: {}]
  %s4 = inlined_call_operand.hbm [shape: f32[16,128], index: 4, kind: input, shape index: {}]
  %s5 = inlined_call_operand.hbm [shape: f32[16,128], index: 5, kind: output, shape index: {}]
  %s6 = sld [smem:[#allocation0]]
  $region50: #{tpu_custom_call.1} parent=0
    _
  %s8 = ssub.s32 1, %s6
  %s9 = scalar_select 0, %s8, %s6
  $region1: #{tpu_custom_call.1} parent=0
    #allocation2 [shape = 'u8[2048]{0}', space=smem, size = 0x800, scoped, tag = 'input window, operand 0, single buffered']
    #allocation3 [shape = 's32[1]{0}', space=sflag, size = 0x4, scoped, tag = 'scoped memory for tpu_custom_call.1']
    #allocation4 [shape = 's32[1]{0}', space=sflag, size = 0x4, scoped, tag = 'scoped memory for tpu_custom_call.1']
    #allocation5 [shape = 's32[1]{0}', space=sflag, size = 0x4, scoped, tag = 'scoped memory for tpu_custom_call.1']
    #allocation6 [shape = 's32[1]{0}', space=sflag, size = 0x4, scoped, tag = 'scoped memory for tpu_custom_call.1']
    #allocation7 [shape = 'u8[512]{0}', space=smem, size = 0x200, scoped, tag = 'input window, operand 1, single buffered']
    #allocation8 [shape = 'u8[1024]{0}', space=smem, size = 0x400, scoped, tag = 'input window, operand 2, single buffered']
    #allocation9 [shape = 's32[1]{0}', space=sflag, size = 0x4, scoped, tag = 'scoped memory for tpu_custom_call.1']
    #allocation10 [shape = 'u8[512]{0}', space=smem, size = 0x200, scoped, tag = 'input window, operand 3, single buffered']
    #allocation11 [shape = 'u8[8192]{0}', space=vmem, size = 0x2000, scoped, tag = 'input window, operand 4, single buffered']
    #allocation12 [shape = 'u8[8192]{0}', space=vmem, size = 0x2000, scoped, tag = 'output window, operand 0, single buffered']
    %10 = vsyncpa [#allocation5], 0
    %11 = vsyncpa [#allocation6], 0
    %12 = vsyncpa [#allocation9], 0
    %13 = vsyncpa [#allocation3], 0
    %14 = vsyncpa [#allocation4], 0
    // Predicated region
    $region2: #{tpu_custom_call.1} parent=1 // pred_check
      _
    $region3: #{tpu_custom_call.1} parent=1 // pred_check_branch
      %16 = sbr.rel (0) target = $region5
    $region4: #{tpu_custom_call.1} parent=1 // pred_region
      %s18 = ssub.s32 64, 64
      %19 = vsyncadd [#allocation5], %s18
      %22 = dma.hbm_to_smem %s0, 64, [#allocation2], [#allocation5]
    $region5: #{tpu_custom_call.1} parent=1 // pred_fallthru
      _
    // Predicated region
    $region6: #{tpu_custom_call.1} parent=1 // pred_check
      _
    $region7: #{tpu_custom_call.1} parent=1 // pred_check_branch
      %24 = sbr.rel (0) target = $region9
    $region8: #{tpu_custom_call.1} parent=1 // pred_region
      %s26 = ssub.s32 16, 16
      %27 = vsyncadd [#allocation6], %s26
      %s29 = sshll.u32 %s1, 4
      %s30 = int_to_ptr.vmem [resolvable:$true] %s29
      %32 = dma.vmem_to_smem %s30, 16, [#allocation7], [#allocation6]
    $region9: #{tpu_custom_call.1} parent=1 // pred_fallthru
      _
    // Predicated region
    $region10: #{tpu_custom_call.1} parent=1 // pred_check
      _
    $region11: #{tpu_custom_call.1} parent=1 // pred_check_branch
      %34 = sbr.rel (0) target = $region13
    $region12: #{tpu_custom_call.1} parent=1 // pred_region
      %s36 = ssub.s32 32, 32
      %37 = vsyncadd [#allocation9], %s36
      %s39 = sshll.u32 %s2, 4
      %s40 = int_to_ptr.vmem [resolvable:$true] %s39
      %42 = dma.vmem_to_smem %s40, 32, [#allocation8], [#allocation9]
    $region13: #{tpu_custom_call.1} parent=1 // pred_fallthru
      _
    // Predicated region
    $region14: #{tpu_custom_call.1} parent=1 // pred_check
      _
    $region15: #{tpu_custom_call.1} parent=1 // pred_check_branch
      %44 = sbr.rel (0) target = $region17
    $region16: #{tpu_custom_call.1} parent=1 // pred_region
      %s46 = ssub.s32 16, 16
      %47 = vsyncadd [#allocation9], %s46
      %s49 = sshll.u32 %s3, 4
      %s50 = int_to_ptr.vmem [resolvable:$true] %s49
      %52 = dma.vmem_to_smem %s50, 16, [#allocation10], [#allocation9]
    $region17: #{tpu_custom_call.1} parent=1 // pred_fallthru
      _
    // Predicated region
    $region18: #{tpu_custom_call.1} parent=1 // pred_check
      _
    $region19: #{tpu_custom_call.1} parent=1 // pred_check_branch
      %54 = sbr.rel (0) target = $region21
    $region20: #{tpu_custom_call.1} parent=1 // pred_region
      %s56 = ssub.s32 256, 256
      %57 = vsyncadd [#allocation3], %s56
      %s58 = sshll.u32 [#allocation11], 4
      %s59 = int_to_ptr.vmem [resolvable:$true] %s58
      %64 = dma.hbm_to_vmem [thread:$0]  %s4, 256, %s59, [#allocation3], 128, 128, 8
    $region21: #{tpu_custom_call.1} parent=1 // pred_fallthru
      _
    // Predicated region
    $region22: #{tpu_custom_call.1} parent=1 // pred_check
      _
    $region23: #{tpu_custom_call.1} parent=1 // pred_check_branch
      %66 = sbr.rel (0) target = $region25
    $region24: #{tpu_custom_call.1} parent=1 // pred_region
      %67 = dma.done [#allocation5], 64
    $region25: #{tpu_custom_call.1} parent=1 // pred_fallthru
      _
    // Predicated region
    $region26: #{tpu_custom_call.1} parent=1 // pred_check
      _
    $region27: #{tpu_custom_call.1} parent=1 // pred_check_branch
      %69 = sbr.rel (0) target = $region29
    $region28: #{tpu_custom_call.1} parent=1 // pred_region
      %70 = dma.done [#allocation6], 16
    $region29: #{tpu_custom_call.1} parent=1 // pred_fallthru
      _
    // Predicated region
    $region30: #{tpu_custom_call.1} parent=1 // pred_check
      _
    $region31: #{tpu_custom_call.1} parent=1 // pred_check_branch
      %72 = sbr.rel (0) target = $region33
    $region32: #{tpu_custom_call.1} parent=1 // pred_region
      %73 = dma.done [#allocation9], 32
    $region33: #{tpu_custom_call.1} parent=1 // pred_fallthru
      _
    // Predicated region
    $region34: #{tpu_custom_call.1} parent=1 // pred_check
      _
    $region35: #{tpu_custom_call.1} parent=1 // pred_check_branch
      %75 = sbr.rel (0) target = $region37
    $region36: #{tpu_custom_call.1} parent=1 // pred_region
      %76 = dma.done [#allocation9], 16
    $region37: #{tpu_custom_call.1} parent=1 // pred_fallthru
      _
    // Predicated region
    $region38: #{tpu_custom_call.1} parent=1 // pred_check
      _
    $region39: #{tpu_custom_call.1} parent=1 // pred_check_branch
      %78 = sbr.rel (0) target = $region41
    $region40: #{tpu_custom_call.1} parent=1 // pred_region
      %79 = dma.done [#allocation3], 256
    $region41: #{tpu_custom_call.1} parent=1 // pred_fallthru
      _
    %80 = sfence
    %v81 = vld [vmem:[#allocation11] sm:$0xff]
    %v82 = vld [vmem:[#allocation11 + $0x8] sm:$0xff]
    %s83 = sld [smem:[#allocation2]]
    %v84 = vstv %s83
    %v85 = vmul.f32 %v84, %v81
    %s86 = sld [smem:[#allocation2 + $0x80]]
    %v87 = vstv %s86
    %v88 = vmul.f32 %v87, %v81
    %v90 = vrot.slane %v88, 4
    %v92 = vadd.f32 %v85, %v90
    %s93 = sld [smem:[#allocation2 + $0x100]]
    %v94 = vstv %s93
    %v95 = vmul.f32 %v94, %v82
    %v96 = vadd.f32 %v92, %v95
    %s97 = sld [smem:[#allocation2 + $0x180]]
    %v98 = vstv %s97
    %v99 = vmul.f32 %v98, %v82
    %v101 = vrot.slane %v99, 4
    %v103 = vadd.f32 %v96, %v101
    %s104 = sld [smem:[#allocation7]]
    %v105 = vstv %s104
    %v106 = vadd.f32 %v103, %v105
    %s107 = sld [smem:[#allocation2 + $0x1]]
    %v108 = vstv %s107
    %v109 = vmul.f32 %v108, %v81
    %s110 = sld [smem:[#allocation2 + $0x81]]
    %v111 = vstv %s110
    %v112 = vmul.f32 %v111, %v81
    %v114 = vrot.slane %v112, 4
    %v116 = vadd.f32 %v109, %v114
    %s117 = sld [smem:[#allocation2 + $0x101]]
    %v118 = vstv %s117
    %v119 = vmul.f32 %v118, %v82
    %v120 = vadd.f32 %v116, %v119
    %s121 = sld [smem:[#allocation2 + $0x181]]
    %v122 = vstv %s121
    %v123 = vmul.f32 %v122, %v82
    %v125 = vrot.slane %v123, 4
    %v127 = vadd.f32 %v120, %v125
    %s128 = sld [smem:[#allocation7 + $0x1]]
    %v129 = vstv %s128
    %v130 = vadd.f32 %v127, %v129
    %s131 = sld [smem:[#allocation2 + $0x2]]
    %v132 = vstv %s131
    %v133 = vmul.f32 %v132, %v81
    %s134 = sld [smem:[#allocation2 + $0x82]]
    %v135 = vstv %s134
    %v136 = vmul.f32 %v135, %v81
    %v138 = vrot.slane %v136, 4
    %v140 = vadd.f32 %v133, %v138
    %s141 = sld [smem:[#allocation2 + $0x102]]
    %v142 = vstv %s141
    %v143 = vmul.f32 %v142, %v82
    %v144 = vadd.f32 %v140, %v143
    %s145 = sld [smem:[#allocation2 + $0x182]]
    %v146 = vstv %s145
    %v147 = vmul.f32 %v146, %v82
    %v149 = vrot.slane %v147, 4
    %v151 = vadd.f32 %v144, %v149
    %s152 = sld [smem:[#allocation7 + $0x2]]
    %v153 = vstv %s152
    %v154 = vadd.f32 %v151, %v153
    %s155 = sld [smem:[#allocation2 + $0x3]]
    %v156 = vstv %s155
    %v157 = vmul.f32 %v156, %v81
    %s158 = sld [smem:[#allocation2 + $0x83]]
    %v159 = vstv %s158
    %v160 = vmul.f32 %v159, %v81
    %v162 = vrot.slane %v160, 4
    %v164 = vadd.f32 %v157, %v162
    %s165 = sld [smem:[#allocation2 + $0x103]]
    %v166 = vstv %s165
    %v167 = vmul.f32 %v166, %v82
    %v168 = vadd.f32 %v164, %v167
    %s169 = sld [smem:[#allocation2 + $0x183]]
    %v170 = vstv %s169
    %v171 = vmul.f32 %v170, %v82
    %v173 = vrot.slane %v171, 4
    %v175 = vadd.f32 %v168, %v173
    %s176 = sld [smem:[#allocation7 + $0x3]]
    %v177 = vstv %s176
    %v178 = vadd.f32 %v175, %v177
    %s179 = sld [smem:[#allocation2 + $0x4]]
    %v180 = vstv %s179
    %v181 = vmul.f32 %v180, %v81
    %s182 = sld [smem:[#allocation2 + $0x84]]
    %v183 = vstv %s182
    %v184 = vmul.f32 %v183, %v81
    %v186 = vrot.slane %v184, 4
    %v188 = vadd.f32 %v181, %v186
    %s189 = sld [smem:[#allocation2 + $0x104]]
    %v190 = vstv %s189
    %v191 = vmul.f32 %v190, %v82
    %v192 = vadd.f32 %v188, %v191
    %s193 = sld [smem:[#allocation2 + $0x184]]
    %v194 = vstv %s193
    %v195 = vmul.f32 %v194, %v82
    %v197 = vrot.slane %v195, 4
    %v199 = vadd.f32 %v192, %v197
    %s200 = sld [smem:[#allocation7 + $0x4]]
    %v201 = vstv %s200
    %v202 = vadd.f32 %v199, %v201
    %s203 = sld [smem:[#allocation2 + $0x5]]
    %v204 = vstv %s203
    %v205 = vmul.f32 %v204, %v81
    %s206 = sld [smem:[#allocation2 + $0x85]]
    %v207 = vstv %s206
    %v208 = vmul.f32 %v207, %v81
    %v210 = vrot.slane %v208, 4
    %v212 = vadd.f32 %v205, %v210
    %s213 = sld [smem:[#allocation2 + $0x105]]
    %v214 = vstv %s213
    %v215 = vmul.f32 %v214, %v82
    %v216 = vadd.f32 %v212, %v215
    %s217 = sld [smem:[#allocation2 + $0x185]]
    %v218 = vstv %s217
    %v219 = vmul.f32 %v218, %v82
    %v221 = vrot.slane %v219, 4
    %v223 = vadd.f32 %v216, %v221
    %s224 = sld [smem:[#allocation7 + $0x5]]
    %v225 = vstv %s224
    %v226 = vadd.f32 %v223, %v225
    %vm227 = vcmask 1043456
    %v228 = vsel %vm227, %v154, -inf
    %v229 = vrot.slane %v228, 4
    %v230 = vmax.f32 %v228, %v229
    %v231 = vrot.slane %v230, 2
    %v232 = vmax.f32 %v230, %v231
    %v233 = vrot.slane %v232, 1
    %v234 = vmax.f32 %v232, %v233
    %v235 = vsel %vm227, %v178, -inf
    %v236 = vrot.slane %v235, 4
    %v237 = vmax.f32 %v235, %v236
    %v238 = vrot.slane %v237, 2
    %v239 = vmax.f32 %v237, %v238
    %v240 = vrot.slane %v239, 1
    %v241 = vmax.f32 %v239, %v240
    %v242 = vsel %vm227, %v202, -inf
    %v243 = vrot.slane %v242, 4
    %v244 = vmax.f32 %v242, %v243
    %v245 = vrot.slane %v244, 2
    %v246 = vmax.f32 %v244, %v245
    %v247 = vrot.slane %v246, 1
    %v248 = vmax.f32 %v246, %v247
    %v249 = vsel %vm227, %v226, -inf
    %v250 = vrot.slane %v249, 4
    %v251 = vmax.f32 %v249, %v250
    %v252 = vrot.slane %v251, 2
    %v253 = vmax.f32 %v251, %v252
    %v254 = vrot.slane %v253, 1
    %v255 = vmax.f32 %v253, %v254
    %vm256 = vcmask 1040384
    %v257 = vsel %vm256, %v234, %v241
    %vm258 = vcmask 1041408
    %v259 = vsel %vm258, %v257, %v248
    %vm260 = vcmask 1042432
    %v261 = vsel %vm260, %v259, %v255
    %v262 = vlaneseq
    %v263 = vand.u32 %v262, 127
    %vm264 = vcmp.lt.s32.totalorder %v263, 0
    %v265 = vsub.s32 0, %v263
    %v266 = vsel %vm264, %v265, %v263
    %v267 = vshrl.u32 %v266, 2
    %v268 = vand.u32 %v266, 3
    %v269 = vsub.s32 0, %v268
    %v270 = vsel %vm264, %v269, %v268
    %vm271 = vcmp.ne.s32.totalorder %v270, 0
    %vm272 = vcmp.lt.s32.totalorder %v270, 0
    %vm273 = vmand %vm272, %vm271
    %v274 = vadd.s32 %v270, 4
    %v275 = vsel %vm273, %v274, %v270
    %277 = vrot.lane.b32.xlu0 %v261, 127
    %v278 = vpop.permute.xlu0 %277
    %280 = vrot.lane.b32.xlu0 %v261, 3
    %v281 = vpop.permute.xlu0 %280
    %vm283 = vcmp.lt.s32.totalorder %v275, 3
    %v284 = vsel %vm283, %v278, %v281
    %285 = vrot.lane.b32.xlu0 %v261, 126
    %v286 = vpop.permute.xlu0 %285
    %288 = vrot.lane.b32.xlu0 %v261, 2
    %v289 = vpop.permute.xlu0 %288
    %vm291 = vcmp.lt.s32.totalorder %v275, 2
    %v292 = vsel %vm291, %v286, %v289
    %293 = vrot.lane.b32.xlu0 %v261, 125
    %v294 = vpop.permute.xlu0 %293
    %296 = vrot.lane.b32.xlu0 %v261, 1
    %v297 = vpop.permute.xlu0 %296
    %vm299 = vcmp.lt.s32.totalorder %v275, 1
    %v300 = vsel %vm299, %v294, %v297
    %v301 = vlaneseq
    %v302 = vshrl.u32 %v301, 7
    %v303 = vsub.s32 0, %v302
    %v304 = vrot.slane %v261, %v303
    %v305 = vmul.f32 %v106, %v304
    %v306 = vlaneseq
    %v307 = vshrl.u32 %v306, 7
    %v308 = vsub.s32 1, %v307
    %v309 = vrot.slane %v261, %v308
    %v310 = vmul.f32 %v130, %v309
    %v311 = vadd.f32 %v305, %v310
    %v312 = vlaneseq
    %v313 = vshrl.u32 %v312, 7
    %v314 = vsub.s32 0, %v313
    %v315 = vrot.slane %v284, %v314
    %v316 = vmul.f32 %v106, %v315
    %v317 = vlaneseq
    %v318 = vshrl.u32 %v317, 7
    %v319 = vsub.s32 1, %v318
    %v320 = vrot.slane %v284, %v319
    %v321 = vmul.f32 %v130, %v320
    %v322 = vadd.f32 %v316, %v321
    %v323 = vlaneseq
    %v324 = vshrl.u32 %v323, 7
    %v325 = vsub.s32 0, %v324
    %v326 = vrot.slane %v292, %v325
    %v327 = vmul.f32 %v106, %v326
    %v328 = vlaneseq
    %v329 = vshrl.u32 %v328, 7
    %v330 = vsub.s32 1, %v329
    %v331 = vrot.slane %v292, %v330
    %v332 = vmul.f32 %v130, %v331
    %v333 = vadd.f32 %v327, %v332
    %v334 = vlaneseq
    %v335 = vshrl.u32 %v334, 7
    %v336 = vsub.s32 0, %v335
    %v337 = vrot.slane %v300, %v336
    %v338 = vmul.f32 %v106, %v337
    %v339 = vlaneseq
    %v340 = vshrl.u32 %v339, 7
    %v341 = vsub.s32 1, %v340
    %v342 = vrot.slane %v300, %v341
    %v343 = vmul.f32 %v130, %v342
    %v344 = vadd.f32 %v338, %v343
    %v345 = vmax.f32 %v311, %v322
    %v346 = vmax.f32 %v345, %v333
    %v347 = vmax.f32 %v346, %v344
    %v348 = vsub.f32 %v311, %v347
    %v349 = vmul.f32 %v348, 1.442695
    %v350 = vpow.pop %v349
    %v351 = vsub.f32 %v322, %v347
    %v352 = vmul.f32 %v351, 1.442695
    %v353 = vpow.pop %v352
    %v354 = vsub.f32 %v333, %v347
    %v355 = vmul.f32 %v354, 1.442695
    %v356 = vpow.pop %v355
    %v357 = vsub.f32 %v344, %v347
    %v358 = vmul.f32 %v357, 1.442695
    %v359 = vpow.pop %v358
    %v360 = vadd.f32 %v350, %v353
    %v361 = vadd.f32 %v360, %v356
    %v362 = vadd.f32 %v361, %v359
    %v363 = vrcp.pop %v362
    %v364 = vmul.f32 %v350, %v363
    %v365 = vmul.f32 %v353, %v363
    %v366 = vmul.f32 %v356, %v363
    %v367 = vmul.f32 %v359, %v363
    %v368 = vlaneseq
    %v369 = vshrl.u32 %v368, 7
    %v370 = vsub.s32 2, %v369
    %v371 = vrot.slane %v261, %v370
    %v372 = vmul.f32 %v364, %v371
    %v373 = vlaneseq
    %v374 = vshrl.u32 %v373, 7
    %v375 = vsub.s32 2, %v374
    %v376 = vrot.slane %v284, %v375
    %v377 = vmul.f32 %v365, %v376
    %v378 = vadd.f32 %v372, %v377
    %v379 = vlaneseq
    %v380 = vshrl.u32 %v379, 7
    %v381 = vsub.s32 2, %v380
    %v382 = vrot.slane %v292, %v381
    %v383 = vmul.f32 %v366, %v382
    %v384 = vadd.f32 %v378, %v383
    %v385 = vlaneseq
    %v386 = vshrl.u32 %v385, 7
    %v387 = vsub.s32 2, %v386
    %v388 = vrot.slane %v300, %v387
    %v389 = vmul.f32 %v367, %v388
    %v390 = vadd.f32 %v384, %v389
    %v391 = vlaneseq
    %v392 = vshrl.u32 %v391, 7
    %v393 = vsub.s32 3, %v392
    %v394 = vrot.slane %v261, %v393
    %v395 = vmul.f32 %v364, %v394
    %v396 = vlaneseq
    %v397 = vshrl.u32 %v396, 7
    %v398 = vsub.s32 3, %v397
    %v399 = vrot.slane %v284, %v398
    %v400 = vmul.f32 %v365, %v399
    %v401 = vadd.f32 %v395, %v400
    %v402 = vlaneseq
    %v403 = vshrl.u32 %v402, 7
    %v404 = vsub.s32 3, %v403
    %v405 = vrot.slane %v292, %v404
    %v406 = vmul.f32 %v366, %v405
    %v407 = vadd.f32 %v401, %v406
    %v408 = vlaneseq
    %v409 = vshrl.u32 %v408, 7
    %v410 = vsub.s32 3, %v409
    %v411 = vrot.slane %v300, %v410
    %v412 = vmul.f32 %v367, %v411
    %v413 = vadd.f32 %v407, %v412
    %s414 = sld [smem:[#allocation8]]
    %v415 = vstv %s414
    %v416 = vmul.f32 %v415, %v390
    %s417 = sld [smem:[#allocation8 + $0x80]]
    %v418 = vstv %s417
    %v419 = vmul.f32 %v418, %v413
    %v420 = vadd.f32 %v416, %v419
    %s421 = sld [smem:[#allocation10]]
    %v422 = vstv %s421
    %v423 = vadd.f32 %v420, %v422
    %v424 = vadd.f32 %v423, %v81
    %s425 = sld [smem:[#allocation8 + $0x1]]
    %v426 = vstv %s425
    %v427 = vmul.f32 %v426, %v390
    %s428 = sld [smem:[#allocation8 + $0x81]]
    %v429 = vstv %s428
    %v430 = vmul.f32 %v429, %v413
    %v431 = vadd.f32 %v427, %v430
    %s432 = sld [smem:[#allocation10 + $0x1]]
    %v433 = vstv %s432
    %v434 = vadd.f32 %v431, %v433
    %v436 = vrot.slane %v81, 4
    %v438 = vadd.f32 %v434, %v436
    %s439 = sld [smem:[#allocation8 + $0x2]]
    %v440 = vstv %s439
    %v441 = vmul.f32 %v440, %v390
    %s442 = sld [smem:[#allocation8 + $0x82]]
    %v443 = vstv %s442
    %v444 = vmul.f32 %v443, %v413
    %v445 = vadd.f32 %v441, %v444
    %s446 = sld [smem:[#allocation10 + $0x2]]
    %v447 = vstv %s446
    %v448 = vadd.f32 %v445, %v447
    %v449 = vadd.f32 %v448, %v82
    %s450 = sld [smem:[#allocation8 + $0x3]]
    %v451 = vstv %s450
    %v452 = vmul.f32 %v451, %v390
    %s453 = sld [smem:[#allocation8 + $0x83]]
    %v454 = vstv %s453
    %v455 = vmul.f32 %v454, %v413
    %v456 = vadd.f32 %v452, %v455
    %s457 = sld [smem:[#allocation10 + $0x3]]
    %v458 = vstv %s457
    %v459 = vadd.f32 %v456, %v458
    %v461 = vrot.slane %v82, 4
    %v463 = vadd.f32 %v459, %v461
    %v465 = vrot.slane %v438, 4
    %v468 = vrot.slane %v463, 4
    %v470 = vsel %vm227, %v424, %v465
    %v471 = vsel %vm227, %v449, %v468
    %472 = vst [vmem:[#allocation12] sm:$0xff] %v470
    %473 = vst [vmem:[#allocation12 + $0x8] sm:$0xff] %v471
    // Predicated region
    $region42: #{tpu_custom_call.1} parent=1 // pred_check
      _
    $region43: #{tpu_custom_call.1} parent=1 // pred_check_branch
      %475 = sbr.rel (0) target = $region45
    $region44: #{tpu_custom_call.1} parent=1 // pred_region
      %s477 = ssub.s32 256, 256
      %478 = vsyncadd [#allocation4], %s477
      %s479 = sshll.u32 [#allocation12], 4
      %s480 = int_to_ptr.vmem [resolvable:$true] %s479
      %485 = dma.vmem_to_hbm [thread:$0]  %s480, 256, %s5, [#allocation4], 128, 128, 8
    $region45: #{tpu_custom_call.1} parent=1 // pred_fallthru
      _
    // Predicated region
    $region46: #{tpu_custom_call.1} parent=1 // pred_check
      _
    $region47: #{tpu_custom_call.1} parent=1 // pred_check_branch
      %487 = sbr.rel (0) target = $region49
    $region48: #{tpu_custom_call.1} parent=1 // pred_region
      %488 = dma.done [#allocation4], 256
    $region49: #{tpu_custom_call.1} parent=1 // pred_fallthru
      _
    %489 = vsyncpa [#allocation3], 1
    %490 = vsyncpa [#allocation4], 1
    %491 = vsyncpa [#allocation5], 1
    %492 = vsyncpa [#allocation6], 1
    %493 = vsyncpa [#allocation9], 1

</llo_original>
